<compile_context>
chip_gen: v7x
topology: tpu7x:2x2x1
jax: 0.10.0
libtpu: 0.0.40
codegen_flags: <defaults>
</compile_context>

<pallas_src>
import functools
import math

import jax
import jax.numpy as jnp
from jax import lax
from jax.experimental import pallas as pl
from jax.experimental.pallas import tpu as pltpu


def _ls_loss_kernel(x_ref, tl_ref, out_ref, *, C, k, padding_idx, fill,
                    confidence, row_const):
    """One folded row-tile.

    x_ref : (TN, k*C)  log-probs; k original rows folded into the lane dim.
    tl_ref: (TN, k)    int32; per original row: lane index of the confidence
                       class inside its group (j*C + target), or -1 if the
                       row is a padding row.
    out_ref: (1, 8, 128) f32; the block partial is splatted into it.
    """
    x = x_ref[...].astype(jnp.float32)                 # (TN, W)
    tl = tl_ref[...]                                   # (TN, k) int32

    lane = lax.broadcasted_iota(jnp.int32, x.shape, 1)

    if k > 1:
        # 128 % C == 0 implies C is a power of two -> cheap shift / mask.
        shift = int(math.log2(C))
        gid = lane >> shift                            # group id per lane
        cls = lane & (C - 1)                           # class id within group
        # Expand per-original-row target lane to a per-element value.
        tl_e = jnp.where(gid == 0, tl[:, 0:1], -1)
        for j in range(1, k):
            tl_e = jnp.where(gid == j, tl[:, j:j + 1], tl_e)
    else:
        cls = lane
        tl_e = tl[:, 0:1]                              # broadcasts over lanes

    is_tgt = lane == tl_e          # confidence position (never the pad col)
    valid = tl_e >= 0              # element belongs to a non-padding row
    not_pad = cls != padding_idx   # true_dist[:, padding_idx] = 0

    # Per-element true_dist weight: {0, fill, confidence}.
    w = jnp.where(is_tgt, confidence,
                  jnp.where(valid & not_pad, fill, 0.0))

    # KLDiv(sum) = sum(td*log td) - sum(td*x); the first term is row_const
    # per valid row (td is 3-valued), the second is the weighted sum below.
    dot_term = jnp.sum(x * w)
    n_valid = jnp.sum(jnp.where(tl >= 0, 1.0, 0.0))    # tiny (TN, k) reduce
    partial = n_valid * row_const - dot_term

    out_ref[...] = jnp.full(out_ref.shape, partial, jnp.float32)


def label_smoothing_loss(x, target, *, size, padding_idx, smoothing,
                         tile_rows=None,
                         pipeline_bytes=32 * 1024 * 1024,
                         vmem_limit_bytes=48 * 1024 * 1024):
    """Pallas wrapper. x: (N, size) log-probs (f32 or bf16), target: (N,) ints."""
    N, C = x.shape
    assert C == size
    itemsize = jnp.dtype(x.dtype).itemsize

    # Lane folding factor: pack k original rows into one 128-wide row.
    k = 128 // C if (C < 128 and 128 % C == 0) else 1
    W = k * C

    # Per-original-row confidence lane (sentinel -1 for padding rows).
    target = target.astype(jnp.int32)
    if k > 1:
        groups = jnp.arange(N, dtype=jnp.int32) % k
    else:
        groups = jnp.zeros((N,), jnp.int32)
    tl = jnp.where(target == padding_idx, -1, groups * C + target)   # (N,)

    # --- tile sizing from the PADDED VMEM footprint ---------------------
    # Physical bytes per folded row (last dim rounds up to 128 lanes):
    bytes_x_row = ((W + 127) // 128) * 128 * itemsize
    bytes_t_row = 128 * 4                    # (tn, k) int32 pads to 128 lanes
    per_row = 2 * (bytes_x_row + bytes_t_row)    # x2 for double buffering
    sub = 8 if itemsize >= 4 else 16             # sublane packing granularity
    auto_rows = max(sub, (pipeline_bytes // per_row) // sub * sub)

    rows_f = pl.cdiv(N, k)                       # folded rows of real data
    rows_f_rounded = pl.cdiv(rows_f, sub) * sub
    if tile_rows is None:
        tn = min(auto_rows, rows_f_rounded)
    else:
        tn = min(max(sub, (int(tile_rows) // sub) * sub), rows_f_rounded)

    grid = pl.cdiv(rows_f, tn)
    n_pad = grid * tn * k                        # original rows after padding

    if n_pad != N:
        # Padded rows get sentinel -1 -> contribute exactly 0.
        x = jnp.pad(x, ((0, n_pad - N), (0, 0)))
        tl = jnp.pad(tl, (0, n_pad - N), constant_values=-1)

    x_f = x.reshape(n_pad // k, W)               # free row-major reshape
    tl_f = tl.reshape(n_pad // k, k)

    confidence = 1.0 - smoothing
    fill = smoothing / (size - 2)
    log_conf = math.log(confidence) if confidence > 0.0 else 0.0
    log_fill = math.log(fill) if fill > 0.0 else 0.0
    row_const = (size - 2) * fill * log_fill + confidence * log_conf

    kernel = functools.partial(
        _ls_loss_kernel, C=C, k=k, padding_idx=padding_idx,
        fill=fill, confidence=confidence, row_const=row_const)

    partials = pl.pallas_call(
        kernel,
        out_shape=jax.ShapeDtypeStruct((grid, 8, 128), jnp.float32),
        grid_spec=pltpu.PrefetchScalarGridSpec(
            num_scalar_prefetch=0,
            grid=(grid,),
            in_specs=[
                pl.BlockSpec((tn, W), lambda i: (i, 0)),
                pl.BlockSpec((tn, k), lambda i: (i, 0)),
            ],
            out_specs=pl.BlockSpec((1, 8, 128), lambda i: (i, 0, 0)),
        ),
        compiler_params=pltpu.CompilerParams(
            dimension_semantics=("parallel",),
            vmem_limit_bytes=vmem_limit_bytes,
        ),
    )(x_f, tl_f)

    # Splat store -> every element of a block tile equals that block's partial.
    return jnp.sum(partials[:, 0, 0])


def _reference_loss(x, target, *, size, padding_idx, smoothing):
    """Plain-JAX reference mirroring the PyTorch forward."""
    confidence = 1.0 - smoothing
    fill = smoothing / (size - 2)
    N, C = x.shape
    td = jnp.full((N, C), fill, dtype=jnp.float32)
    td = td.at[jnp.arange(N), target].set(confidence)
    td = td.at[:, padding_idx].set(0.0)
    td = jnp.where((target == padding_idx)[:, None], 0.0, td)
    contrib = jnp.where(td > 0.0, td * (jnp.log(td) - x.astype(jnp.float32)),
                        0.0)
    return jnp.sum(contrib)


if __name__ == "__main__":
    # Module config (deterministic, synthetic)
    SIZE = 32          # number of classes
    PADDING_IDX = 0
    SMOOTHING = 0.1

    # Example inputs (N deliberately not a multiple of the fold/tile)
    N = 50
    key = jax.random.PRNGKey(0)
    kx, kt = jax.random.split(key)
    logits = jax.random.normal(kx, (N, SIZE), dtype=jnp.float32)
    x = jax.nn.log_softmax(logits, axis=-1)          # KLDivLoss expects log-probs
    target = jax.random.randint(kt, (N,), 0, SIZE, dtype=jnp.int32)
    # ensure some padded rows get exercised
    target = target.at[3].set(PADDING_IDX)
    target = target.at[11].set(PADDING_IDX)

    ref = _reference_loss(
        x, target, size=SIZE, padding_idx=PADDING_IDX, smoothing=SMOOTHING)

    # 1) default (single big folded tile)
    loss = label_smoothing_loss(
        x, target, size=SIZE, padding_idx=PADDING_IDX, smoothing=SMOOTHING)
    loss = jax.block_until_ready(loss)
    assert jnp.allclose(loss, ref, rtol=1e-4, atol=1e-4), (loss, ref)

    # 2) small tile -> multiple grid blocks + ragged-tail padding path
    loss2 = label_smoothing_loss(
        x, target, size=SIZE, padding_idx=PADDING_IDX, smoothing=SMOOTHING,
        tile_rows=8)
    loss2 = jax.block_until_ready(loss2)
    assert jnp.allclose(loss2, ref, rtol=1e-4, atol=1e-4), (loss2, ref)

    print("KERNEL_OK")
</pallas_src>

<mosaic_0001>
module attributes {stable_mosaic.version = 11 : i64} {
  func.func @_ls_loss_kernel(%arg0: i32, %arg1: memref<16x128xf32, #tpu.memory_space<vmem>>, %arg2: memref<16x4xi32, #tpu.memory_space<vmem>>, %arg3: memref<1x8x128xf32, #tpu.memory_space<vmem>>) attributes {dimension_semantics = [#tpu.dimension_semantics<parallel>], iteration_bounds = array<i64: 1>, scalar_prefetch = 0 : i64, scratch_operands = 0 : i64, tpu.core_type = #tpu.core_type<tc>, window_params = [{transform_indices = @transform_0, window_bounds = array<i64: 16, 128>}, {transform_indices = @transform_1, window_bounds = array<i64: 16, 4>}, {transform_indices = @transform_2, window_bounds = array<i64: 1, 8, 128>}]} {
    %c0 = arith.constant 0 : index
    %c0_0 = arith.constant 0 : index
    %0 = vector.load %arg1[%c0, %c0_0] : memref<16x128xf32, #tpu.memory_space<vmem>>, vector<16x128xf32>
    %c0_1 = arith.constant 0 : index
    %c0_2 = arith.constant 0 : index
    %1 = vector.load %arg2[%c0_1, %c0_2] : memref<16x4xi32, #tpu.memory_space<vmem>>, vector<16x4xi32>
    %2 = tpu.iota {dimensions = array<i32: 1>} : vector<16x128xi32>
    %c5_i32 = arith.constant 5 : i32
    %3 = vector.broadcast %c5_i32 : i32 to vector<16x128xi32>
    %4 = arith.shrsi %2, %3 : vector<16x128xi32>
    %c31_i32 = arith.constant 31 : i32
    %5 = vector.broadcast %c31_i32 : i32 to vector<16x128xi32>
    %6 = arith.andi %2, %5 : vector<16x128xi32>
    %c0_i32 = arith.constant 0 : i32
    %7 = vector.broadcast %c0_i32 : i32 to vector<16x128xi32>
    %8 = arith.cmpi eq, %4, %7 : vector<16x128xi32>
    %9 = vector.extract_strided_slice %1 {offsets = [0, 0], sizes = [16, 1], strides = [1, 1]} : vector<16x4xi32> to vector<16x1xi32>
    %c-1_i32 = arith.constant -1 : i32
    %10 = vector.shape_cast %9 : vector<16x1xi32> to vector<16x1xi32>
    %11 = vector.broadcast %10 : vector<16x1xi32> to vector<16x128xi32>
    %12 = vector.broadcast %c-1_i32 : i32 to vector<16x128xi32>
    %13 = arith.select %8, %11, %12 : vector<16x128xi1>, vector<16x128xi32>
    %c1_i32 = arith.constant 1 : i32
    %14 = vector.broadcast %c1_i32 : i32 to vector<16x128xi32>
    %15 = arith.cmpi eq, %4, %14 : vector<16x128xi32>
    %16 = vector.extract_strided_slice %1 {offsets = [0, 1], sizes = [16, 1], strides = [1, 1]} : vector<16x4xi32> to vector<16x1xi32>
    %17 = vector.shape_cast %16 : vector<16x1xi32> to vector<16x1xi32>
    %18 = vector.broadcast %17 : vector<16x1xi32> to vector<16x128xi32>
    %19 = arith.select %15, %18, %13 : vector<16x128xi1>, vector<16x128xi32>
    %c2_i32 = arith.constant 2 : i32
    %20 = vector.broadcast %c2_i32 : i32 to vector<16x128xi32>
    %21 = arith.cmpi eq, %4, %20 : vector<16x128xi32>
    %22 = vector.extract_strided_slice %1 {offsets = [0, 2], sizes = [16, 1], strides = [1, 1]} : vector<16x4xi32> to vector<16x1xi32>
    %23 = vector.shape_cast %22 : vector<16x1xi32> to vector<16x1xi32>
    %24 = vector.broadcast %23 : vector<16x1xi32> to vector<16x128xi32>
    %25 = arith.select %21, %24, %19 : vector<16x128xi1>, vector<16x128xi32>
    %c3_i32 = arith.constant 3 : i32
    %26 = vector.broadcast %c3_i32 : i32 to vector<16x128xi32>
    %27 = arith.cmpi eq, %4, %26 : vector<16x128xi32>
    %28 = vector.extract_strided_slice %1 {offsets = [0, 3], sizes = [16, 1], strides = [1, 1]} : vector<16x4xi32> to vector<16x1xi32>
    %29 = vector.shape_cast %28 : vector<16x1xi32> to vector<16x1xi32>
    %30 = vector.broadcast %29 : vector<16x1xi32> to vector<16x128xi32>
    %31 = arith.select %27, %30, %25 : vector<16x128xi1>, vector<16x128xi32>
    %32 = arith.cmpi eq, %2, %31 : vector<16x128xi32>
    %c0_i32_3 = arith.constant 0 : i32
    %33 = vector.broadcast %c0_i32_3 : i32 to vector<16x128xi32>
    %34 = arith.cmpi sge, %31, %33 : vector<16x128xi32>
    %c0_i32_4 = arith.constant 0 : i32
    %35 = vector.broadcast %c0_i32_4 : i32 to vector<16x128xi32>
    %36 = arith.cmpi ne, %6, %35 : vector<16x128xi32>
    %37 = arith.andi %34, %36 : vector<16x128xi1>
    %cst = arith.constant 0.00333333341 : f32
    %cst_5 = arith.constant 0.000000e+00 : f32
    %38 = vector.broadcast %cst : f32 to vector<16x128xf32>
    %39 = vector.broadcast %cst_5 : f32 to vector<16x128xf32>
    %40 = arith.select %37, %38, %39 : vector<16x128xi1>, vector<16x128xf32>
    %cst_6 = arith.constant 0.899999976 : f32
    %41 = vector.broadcast %cst_6 : f32 to vector<16x128xf32>
    %42 = arith.select %32, %41, %40 : vector<16x128xi1>, vector<16x128xf32>
    %43 = arith.mulf %0, %42 : vector<16x128xf32>
    %44 = vector.shape_cast %43 : vector<16x128xf32> to vector<1x16x128xf32>
    %cst_7 = arith.constant dense<0.000000e+00> : vector<1xf32>
    %45 = vector.multi_reduction <add>, %44, %cst_7 [1, 2] : vector<1x16x128xf32> to vector<1xf32>
    %46 = vector.shape_cast %45 : vector<1xf32> to vector<1x1x1xf32>
    %47 = vector.extract %46[0, 0, 0] : f32 from vector<1x1x1xf32>
    %c0_i32_8 = arith.constant 0 : i32
    %48 = vector.broadcast %c0_i32_8 : i32 to vector<16x4xi32>
    %49 = arith.cmpi sge, %1, %48 : vector<16x4xi32>
    %cst_9 = arith.constant 1.000000e+00 : f32
    %cst_10 = arith.constant 0.000000e+00 : f32
    %50 = vector.broadcast %cst_9 : f32 to vector<16x4xf32>
    %51 = vector.broadcast %cst_10 : f32 to vector<16x4xf32>
    %52 = arith.select %49, %50, %51 : vector<16x4xi1>, vector<16x4xf32>
    %53 = vector.shape_cast %52 : vector<16x4xf32> to vector<1x16x4xf32>
    %cst_11 = arith.constant dense<0.000000e+00> : vector<1xf32>
    %54 = vector.multi_reduction <add>, %53, %cst_11 [1, 2] : vector<1x16x4xf32> to vector<1xf32>
    %55 = vector.shape_cast %54 : vector<1xf32> to vector<1x1x1xf32>
    %56 = vector.extract %55[0, 0, 0] : f32 from vector<1x1x1xf32>
    %cst_12 = arith.constant -0.665202737 : f32
    %57 = arith.mulf %56, %cst_12 : f32
    %58 = arith.subf %57, %47 : f32
    %59 = vector.broadcast %58 : f32 to vector<1x8x128xf32>
    %c0_13 = arith.constant 0 : index
    %c0_14 = arith.constant 0 : index
    %c0_15 = arith.constant 0 : index
    %60 = vector.load %arg3[%c0_13, %c0_14, %c0_15] : memref<1x8x128xf32, #tpu.memory_space<vmem>>, vector<1x8x128xf32>
    tpu.vector_store %arg3[%c0_13, %c0_14, %c0_15], %59 {strides = array<i32>} : memref<1x8x128xf32, #tpu.memory_space<vmem>>, vector<1x8x128xf32>,
    return
  }
  func.func @transform_0(%arg0: i32) -> (i32, i32) {
    %c0_i32 = arith.constant 0 : i32
    %c0_i32_0 = arith.constant 0 : i32
    return %arg0, %c0_i32 : i32, i32
  }
  func.func @transform_1(%arg0: i32) -> (i32, i32) {
    %c0_i32 = arith.constant 0 : i32
    %c0_i32_0 = arith.constant 0 : i32
    return %arg0, %c0_i32 : i32, i32
  }
  func.func @transform_2(%arg0: i32) -> (i32, i32, i32) {
    %c0_i32 = arith.constant 0 : i32
    %c0_i32_0 = arith.constant 0 : i32
    %c0_i32_1 = arith.constant 0 : i32
    return %arg0, %c0_i32, %c0_i32_0 : i32, i32, i32
  }
}

</mosaic_0001>

<llo_original>
// kernel: tpu_custom_call.1
$region0: #{tpu_custom_call.1}
  #allocation0 [shape = 'u32[]', space=smem, size = 0x4, offset = 0x4, fixed_abs, tag = 'smem constant byte address 0x4 - core index']
  #allocation1 [shape = 'u32[144,128]{1,0:T(1,128)}', space=vmem, size = 0x12000, scoped, tag = 'internal scratch']
  %s0 = inlined_call_operand.vmem [shape: f32[16,128], index: 0, kind: input, shape index: {}]
  %s1 = inlined_call_operand.vmem [shape: s32[16,4], index: 1, kind: input, shape index: {}]
  %s2 = inlined_call_operand.hbm [shape: f32[1,8,128], index: 2, kind: output, shape index: {}]
  %s3 = sld [smem:[#allocation0]]
  $region18: #{tpu_custom_call.1} parent=0
    _
  %s5 = ssub.s32 1, %s3
  %s6 = scalar_select 0, %s5, %s3
  $region1: #{tpu_custom_call.1} parent=0
    #allocation2 [shape = 'u8[4096]{0}', space=vmem, size = 0x1000, scoped, tag = 'output window, operand 0, single buffered']
    #allocation3 [shape = 's32[1]{0}', space=sflag, size = 0x4, scoped, tag = 'scoped memory for tpu_custom_call.1']
    %7 = vsyncpa [#allocation3], 0
    // Predicated region
    $region2: #{tpu_custom_call.1} parent=1 // pred_check
      _
    $region3: #{tpu_custom_call.1} parent=1 // pred_check_branch
      %9 = sbr.rel (0) target = $region5
    $region4: #{tpu_custom_call.1} parent=1 // pred_region
      _
    $region5: #{tpu_custom_call.1} parent=1 // pred_fallthru
      _
    // Predicated region
    $region6: #{tpu_custom_call.1} parent=1 // pred_check
      _
    $region7: #{tpu_custom_call.1} parent=1 // pred_check_branch
      %11 = sbr.rel (0) target = $region9
    $region8: #{tpu_custom_call.1} parent=1 // pred_region
      _
    $region9: #{tpu_custom_call.1} parent=1 // pred_fallthru
      _
    %v12 = vld [vmem:[%s0] sm:$0xff]
    %v13 = vld [vmem:[%s0 + $0x8] sm:$0xff]
    %v14 = vld [vmem:[%s1] sm:$0xff]
    %v15 = vld [vmem:[%s1 + $0x8] sm:$0xff]
    %v16 = vlaneseq
    %v17 = vand.u32 %v16, 127
    %v18 = vshra.s32 %v17, 5
    %v19 = vand.u32 %v17, 31
    %vm20 = vcmp.eq.s32.totalorder %v18, 0
    %21 = vset.pattern.permute.xlu0 0
    %22 = vperm.xlu0 %21, %v14
    %v23 = vpop.permute.xlu0 %22
    %24 = vset.pattern.permute.xlu0 0
    %25 = vperm.xlu0 %24, %v15
    %v26 = vpop.permute.xlu0 %25
    %v27 = vsel %vm20, %v23, 4294967295
    %v28 = vsel %vm20, %v26, 4294967295
    %vm29 = vcmp.eq.s32.totalorder %v18, 1
    %30 = vset.pattern.permute.xlu0 1
    %31 = vperm.xlu0 %30, %v14
    %v32 = vpop.permute.xlu0 %31
    %33 = vset.pattern.permute.xlu0 1
    %34 = vperm.xlu0 %33, %v15
    %v35 = vpop.permute.xlu0 %34
    %v36 = vsel %vm29, %v32, %v27
    %v37 = vsel %vm29, %v35, %v28
    %vm38 = vcmp.eq.s32.totalorder %v18, 2
    %39 = vset.pattern.permute.xlu0 2
    %40 = vperm.xlu0 %39, %v14
    %v41 = vpop.permute.xlu0 %40
    %42 = vset.pattern.permute.xlu0 2
    %43 = vperm.xlu0 %42, %v15
    %v44 = vpop.permute.xlu0 %43
    %v45 = vsel %vm38, %v41, %v36
    %v46 = vsel %vm38, %v44, %v37
    %vm47 = vcmp.eq.s32.totalorder %v18, 3
    %48 = vset.pattern.permute.xlu0 3
    %49 = vperm.xlu0 %48, %v14
    %v50 = vpop.permute.xlu0 %49
    %51 = vset.pattern.permute.xlu0 3
    %52 = vperm.xlu0 %51, %v15
    %v53 = vpop.permute.xlu0 %52
    %v54 = vsel %vm47, %v50, %v45
    %v55 = vsel %vm47, %v53, %v46
    %vm56 = vcmp.eq.s32.totalorder %v17, %v54
    %vm57 = vcmp.eq.s32.totalorder %v17, %v55
    %vm58 = vcmp.ge.s32.totalorder %v54, 0
    %vm59 = vcmp.ge.s32.totalorder %v55, 0
    %vm60 = vcmp.ne.s32.totalorder %v19, 0
    %vm61 = vmand %vm58, %vm60
    %vm62 = vmand %vm59, %vm60
    %v63 = vsel %vm61, 0.0033333334, 0.0
    %v64 = vsel %vm62, 0.0033333334, 0.0
    %v65 = vsel %vm56, 0.9, %v63
    %v66 = vsel %vm57, 0.9, %v64
    %v67 = vmul.f32 %v12, %v65
    %v68 = vmul.f32 %v13, %v66
    %v69 = vadd.f32 %v67, %v68
    %70 = vadd.xlane.f32.xlu0 %v69
    %v71 = vpop.xlane.xlu0 %70
    %v72 = vrot.slane %v71, 4
    %v73 = vadd.f32 %v71, %v72
    %v74 = vrot.slane %v73, 2
    %v75 = vadd.f32 %v73, %v74
    %v76 = vrot.slane %v75, 1
    %v77 = vadd.f32 %v75, %v76
    %s78 = vtos %v77
    %vm79 = vcmp.ge.s32.totalorder %v14, 0
    %vm80 = vcmp.ge.s32.totalorder %v15, 0
    %v81 = vsel %vm79, 1.0, 0.0
    %v82 = vsel %vm80, 1.0, 0.0
    %vm83 = vcmask 31744
    %v84 = vsel %vm83, %v81, 0.0
    %v85 = vsel %vm83, %v82, 0.0
    %v86 = vadd.f32 %v84, %v85
    %87 = vadd.xlane.f32.xlu0 %v86
    %v88 = vpop.xlane.xlu0 %87
    %v89 = vrot.slane %v88, 4
    %v90 = vadd.f32 %v88, %v89
    %v91 = vrot.slane %v90, 2
    %v92 = vadd.f32 %v90, %v91
    %v93 = vrot.slane %v92, 1
    %v94 = vadd.f32 %v92, %v93
    %s95 = vtos %v94
    %s96 = smul.f32 %s95, -0.66520274
    %s97 = ssub.f32 %s96, %s78
    %v98 = vstv %s97
    %99 = vst [vmem:[#allocation2] sm:$0xff] %v98
    // Predicated region
    $region10: #{tpu_custom_call.1} parent=1 // pred_check
      _
    $region11: #{tpu_custom_call.1} parent=1 // pred_check_branch
      %101 = sbr.rel (0) target = $region13
    $region12: #{tpu_custom_call.1} parent=1 // pred_region
      %s103 = ssub.s32 128, 128
      %104 = vsyncadd [#allocation3], %s103
      %s106 = sshll.u32 [#allocation2], 4
      %s107 = int_to_ptr.vmem [resolvable:$true] %s106
      %109 = dma.vmem_to_hbm [thread:$0]  %s107, 128, %s2, [#allocation3]
    $region13: #{tpu_custom_call.1} parent=1 // pred_fallthru
      _
    // Predicated region
    $region14: #{tpu_custom_call.1} parent=1 // pred_check
      _
    $region15: #{tpu_custom_call.1} parent=1 // pred_check_branch
      %111 = sbr.rel (0) target = $region17
    $region16: #{tpu_custom_call.1} parent=1 // pred_region
      %112 = dma.done [#allocation3], 128
    $region17: #{tpu_custom_call.1} parent=1 // pred_fallthru
      _
    %113 = vsyncpa [#allocation3], 1

</llo_original>
